<compile_context>
chip_gen: v6e
topology: v6e:2x2x1
jax: 0.10.0
libtpu: 0.0.40
codegen_flags: <defaults>
</compile_context>

<pallas_src>
import numpy as np
import jax
import jax.numpy as jnp
from jax.experimental import pallas as pl
from jax.experimental.pallas import tpu as pltpu

SIGMA = 0.01
CLIP = 0.05


def _jitter_pointnet_kernel(noise_ref, x_ref, w1_ref, b1_ref, w2_ref, b2_ref,
                            xj_ref, logits_ref, maxacc_ref):
    # noise_ref / x_ref / xj_ref : (3, B, tile_N) coordinate-major (N on lanes)
    # w1_ref : (3, H, 1)   b1_ref : (1, H)   w2_ref : (H, NC)   b2_ref : (1, NC)
    # logits_ref : (B, NC)   maxacc_ref : (B, H) running max across N tiles
    k = pl.program_id(0)
    C = x_ref.shape[0]

    # -- jitter: clamp(sigma * randn, -clip, clip) + x, one packed pass + one store
    jit = jnp.clip(SIGMA * noise_ref[...], -CLIP, CLIP)
    xj = x_ref[...] + jit                                   # (3, B, T)
    xj_ref[...] = xj                                        # writeback (aliases x buffer)

    # -- first "Conv1d" layer (K=3) as 3 VPU FMAs; keep only the per-tile max
    acc = None
    for c in range(C):                                      # static unroll, C == 3
        term = xj[c][:, None, :] * w1_ref[c][None]          # (B,1,T)*(1,H,1) -> (B,H,T)
        acc = term if acc is None else acc + term
    tile_max = jnp.max(acc, axis=-1)                        # (B, H)

    @pl.when(k == 0)
    def _():
        maxacc_ref[...] = jnp.full_like(maxacc_ref, -jnp.inf)

    maxacc_ref[...] = jnp.maximum(maxacc_ref[...], tile_max)

    @pl.when(k == pl.num_programs(0) - 1)
    def _():
        # bias + ReLU after the max-pool (monotonicity), then one MXU head matmul
        pooled = jnp.maximum(maxacc_ref[...] + b1_ref[...], 0.0)       # (B, H)
        logits_ref[...] = (
            jnp.dot(pooled, w2_ref[...], preferred_element_type=jnp.float32)
            + b2_ref[...])


def _pick_tile_n(n):
    # Lane-dense tiles (multiple of 128, >=512 preferred); otherwise take the full axis.
    if n % 128 == 0:
        return min(n, 512)
    return n


def jitter_attack_forward(x, noise_key, w1, b1, w2, b2):
    """x: (B, N, 3) f32. Returns (jittered x (B, N, 3), logits (B, NC))."""
    B, N, C = x.shape
    H = w1.shape[1]
    NC = w2.shape[1]
    tile_n = _pick_tile_n(N)
    n_tiles = N // tile_n

    # torch.randn-equivalent noise (XLA PRNG; the TPU hardware PRNG has no
    # interpret/CPU lowering, so it cannot be used here).
    noise_cm = jax.random.normal(noise_key, (C, B, N), dtype=jnp.float32)

    x_cm = jnp.transpose(x, (2, 0, 1))        # (3, B, N): point axis on lanes
    w1_cm = w1[:, :, None]                    # (3, H, 1)
    b1_row = b1.reshape(1, H)                 # lane-dense
    b2_row = b2.reshape(1, NC)

    xj_cm, logits = pl.pallas_call(
        _jitter_pointnet_kernel,
        grid=(n_tiles,),
        in_specs=[
            pl.BlockSpec((C, B, tile_n), lambda k: (0, 0, k)),   # noise tile
            pl.BlockSpec((C, B, tile_n), lambda k: (0, 0, k)),   # x tile
            pl.BlockSpec((C, H, 1), lambda k: (0, 0, 0)),        # w1
            pl.BlockSpec((1, H), lambda k: (0, 0)),              # b1
            pl.BlockSpec((H, NC), lambda k: (0, 0)),             # w2
            pl.BlockSpec((1, NC), lambda k: (0, 0)),             # b2
        ],
        out_specs=(
            pl.BlockSpec((C, B, tile_n), lambda k: (0, 0, k)),   # jittered cloud
            pl.BlockSpec((B, NC), lambda k: (0, 0)),             # logits (resident)
        ),
        out_shape=(
            jax.ShapeDtypeStruct((C, B, N), jnp.float32),
            jax.ShapeDtypeStruct((B, NC), jnp.float32),
        ),
        scratch_shapes=[pltpu.VMEM((B, H), jnp.float32)],        # running max
        input_output_aliases={1: 0},          # jittered cloud reuses x_cm's HBM buffer
        compiler_params=pltpu.CompilerParams(
            dimension_semantics=("arbitrary",),     # running-max reduction over N tiles
            vmem_limit_bytes=32 * 1024 * 1024,      # safe on v5e / v6e / v7x
        ),
    )(noise_cm, x_cm, w1_cm, b1_row, w2, b2_row)

    return jnp.transpose(xj_cm, (1, 2, 0)), logits


@jax.jit
def _attack(x, target, noise_key, w1, b1, w2, b2):
    xj, logits = jitter_attack_forward(x, noise_key, w1, b1, w2, b2)
    pred = jnp.argmax(logits, axis=-1)
    return xj, logits, jnp.sum(pred == target)


def jitter_attack(x, target, noise_key, params):
    """Mirrors JitterAttack.forward: returns (jittered pc as numpy [B,N,3], acc_num)."""
    w1, b1, w2, b2 = params
    xj, _, acc_num = _attack(x, target, noise_key, w1, b1, w2, b2)
    return np.asarray(xj), int(acc_num)


if __name__ == "__main__":
    B, N, C = 2, 16, 3          # batch of point clouds [B, K, 3]
    H, NUM_CLASSES = 32, 8

    key = jax.random.PRNGKey(0)
    kx, kw1, kb1, kw2, kb2, kt, kn = jax.random.split(key, 7)

    x = jax.random.normal(kx, (B, N, C), dtype=jnp.float32)
    target = jax.random.randint(kt, (B,), 0, NUM_CLASSES, dtype=jnp.int32)

    # deterministic synthetic classifier weights (surrogate "model")
    w1 = jax.random.normal(kw1, (C, H), dtype=jnp.float32) * 0.1
    b1 = jax.random.normal(kb1, (H,), dtype=jnp.float32) * 0.01
    w2 = jax.random.normal(kw2, (H, NUM_CLASSES), dtype=jnp.float32) * 0.1
    b2 = jax.random.normal(kb2, (NUM_CLASSES,), dtype=jnp.float32) * 0.01

    xj, logits, acc_num = _attack(x, target, kn, w1, b1, w2, b2)
    xj = jax.block_until_ready(xj)
    logits = jax.block_until_ready(logits)
    acc_num = int(jax.block_until_ready(acc_num))

    # --- correctness checks --------------------------------------------------
    x_np, xj_np = np.asarray(x), np.asarray(xj)

    # jitter must equal clamp(sigma * randn, -clip, clip) for the same key
    noise_cm = np.asarray(jax.random.normal(kn, (C, B, N), dtype=jnp.float32))
    expected_jitter = np.clip(np.float32(SIGMA) * noise_cm, -CLIP, CLIP)
    expected_jitter = np.transpose(expected_jitter, (1, 2, 0))      # -> (B, N, 3)
    np.testing.assert_allclose(xj_np - x_np, expected_jitter, rtol=1e-5, atol=1e-6)
    assert np.all(np.abs(xj_np - x_np) <= CLIP + 1e-6), "jitter exceeds clip bound"

    # classifier consistency: recompute logits from the kernel's jittered cloud
    h_ref = np.maximum(np.einsum("bnc,ch->bnh", xj_np, np.asarray(w1))
                       + np.asarray(b1), 0.0)
    logits_ref = h_ref.max(axis=1) @ np.asarray(w2) + np.asarray(b2)
    np.testing.assert_allclose(np.asarray(logits), logits_ref, rtol=1e-3, atol=1e-3)
    acc_ref = int((logits_ref.argmax(-1) == np.asarray(target)).sum())
    assert acc_num == acc_ref

    # mirror the PyTorch return: (jittered pc as numpy, number correct)
    result = jitter_attack(x, target, kn, (w1, b1, w2, b2))
    assert result[1] == acc_ref
    print("KERNEL_OK")
</pallas_src>

<mosaic_0001>
module attributes {stable_mosaic.version = 11 : i64} {
  func.func @_jitter_pointnet_kernel(%arg0: i32, %arg1: memref<3x2x16xf32, #tpu.memory_space<vmem>>, %arg2: memref<3x2x16xf32, #tpu.memory_space<vmem>>, %arg3: memref<3x32x1xf32, #tpu.memory_space<vmem>>, %arg4: memref<1x32xf32, #tpu.memory_space<vmem>>, %arg5: memref<32x8xf32, #tpu.memory_space<vmem>>, %arg6: memref<1x8xf32, #tpu.memory_space<vmem>>, %arg7: memref<3x2x16xf32, #tpu.memory_space<vmem>>, %arg8: memref<2x8xf32, #tpu.memory_space<vmem>>, %arg9: memref<2x32xf32, #tpu.memory_space<vmem>>) attributes {dimension_semantics = [#tpu.dimension_semantics<arbitrary>], iteration_bounds = array<i64: 1>, scalar_prefetch = 0 : i64, scratch_operands = 1 : i64, tpu.core_type = #tpu.core_type<tc>, window_params = [{transform_indices = @transform_0, window_bounds = array<i64: 3, 2, 16>}, {transform_indices = @transform_1, window_bounds = array<i64: 3, 2, 16>}, {pipeline_mode = #tpu.pipeline_mode<synchronous>, transform_indices = @transform_2, window_bounds = array<i64: 3, 32, 1>}, {pipeline_mode = #tpu.pipeline_mode<synchronous>, transform_indices = @transform_3, window_bounds = array<i64: 1, 32>}, {pipeline_mode = #tpu.pipeline_mode<synchronous>, transform_indices = @transform_4, window_bounds = array<i64: 32, 8>}, {pipeline_mode = #tpu.pipeline_mode<synchronous>, transform_indices = @transform_5, window_bounds = array<i64: 1, 8>}, {transform_indices = @transform_6, window_bounds = array<i64: 3, 2, 16>}, {pipeline_mode = #tpu.pipeline_mode<synchronous>, transform_indices = @transform_7, window_bounds = array<i64: 2, 8>}]} {
    %c0 = arith.constant 0 : index
    %c0_0 = arith.constant 0 : index
    %c0_1 = arith.constant 0 : index
    %0 = vector.load %arg1[%c0, %c0_0, %c0_1] : memref<3x2x16xf32, #tpu.memory_space<vmem>>, vector<3x2x16xf32>
    %cst = arith.constant 0.00999999977 : f32
    %1 = vector.broadcast %cst : f32 to vector<3x2x16xf32>
    %2 = arith.mulf %1, %0 : vector<3x2x16xf32>
    %cst_2 = arith.constant -5.000000e-02 : f32
    %cst_3 = arith.constant 5.000000e-02 : f32
    %3 = vector.broadcast %cst_2 : f32 to vector<3x2x16xf32>
    %4 = arith.maximumf %3, %2 : vector<3x2x16xf32>
    %5 = vector.broadcast %cst_3 : f32 to vector<3x2x16xf32>
    %6 = arith.minimumf %5, %4 : vector<3x2x16xf32>
    %c0_4 = arith.constant 0 : index
    %c0_5 = arith.constant 0 : index
    %c0_6 = arith.constant 0 : index
    %7 = vector.load %arg2[%c0_4, %c0_5, %c0_6] : memref<3x2x16xf32, #tpu.memory_space<vmem>>, vector<3x2x16xf32>
    %8 = arith.addf %7, %6 : vector<3x2x16xf32>
    %c0_7 = arith.constant 0 : index
    %c0_8 = arith.constant 0 : index
    %c0_9 = arith.constant 0 : index
    %9 = vector.load %arg7[%c0_7, %c0_8, %c0_9] : memref<3x2x16xf32, #tpu.memory_space<vmem>>, vector<3x2x16xf32>
    tpu.vector_store %arg7[%c0_7, %c0_8, %c0_9], %8 {strides = array<i32>} : memref<3x2x16xf32, #tpu.memory_space<vmem>>, vector<3x2x16xf32>,
    %10 = vector.extract_strided_slice %8 {offsets = [0, 0, 0], sizes = [1, 2, 16], strides = [1, 1, 1]} : vector<3x2x16xf32> to vector<1x2x16xf32>
    %11 = vector.shape_cast %10 : vector<1x2x16xf32> to vector<2x16xf32>
    %12 = vector.shape_cast %11 : vector<2x16xf32> to vector<2x1x16xf32>
    %c0_10 = arith.constant 0 : index
    %c0_11 = arith.constant 0 : index
    %c0_12 = arith.constant 0 : index
    %13 = vector.load %arg3[%c0_10, %c0_11, %c0_12] : memref<3x32x1xf32, #tpu.memory_space<vmem>>, vector<1x32x1xf32>
    %14 = vector.shape_cast %13 : vector<1x32x1xf32> to vector<32x1xf32>
    %15 = vector.shape_cast %14 : vector<32x1xf32> to vector<1x32x1xf32>
    %16 = vector.broadcast %12 : vector<2x1x16xf32> to vector<2x32x16xf32>
    %17 = vector.broadcast %15 : vector<1x32x1xf32> to vector<2x32x16xf32>
    %18 = arith.mulf %16, %17 : vector<2x32x16xf32>
    %19 = vector.extract_strided_slice %8 {offsets = [1, 0, 0], sizes = [1, 2, 16], strides = [1, 1, 1]} : vector<3x2x16xf32> to vector<1x2x16xf32>
    %20 = vector.shape_cast %19 : vector<1x2x16xf32> to vector<2x16xf32>
    %21 = vector.shape_cast %20 : vector<2x16xf32> to vector<2x1x16xf32>
    %c1 = arith.constant 1 : index
    %c0_13 = arith.constant 0 : index
    %c0_14 = arith.constant 0 : index
    %22 = vector.load %arg3[%c1, %c0_13, %c0_14] : memref<3x32x1xf32, #tpu.memory_space<vmem>>, vector<1x32x1xf32>
    %23 = vector.shape_cast %22 : vector<1x32x1xf32> to vector<32x1xf32>
    %24 = vector.shape_cast %23 : vector<32x1xf32> to vector<1x32x1xf32>
    %25 = vector.broadcast %21 : vector<2x1x16xf32> to vector<2x32x16xf32>
    %26 = vector.broadcast %24 : vector<1x32x1xf32> to vector<2x32x16xf32>
    %27 = arith.mulf %25, %26 : vector<2x32x16xf32>
    %28 = arith.addf %18, %27 : vector<2x32x16xf32>
    %29 = vector.extract_strided_slice %8 {offsets = [2, 0, 0], sizes = [1, 2, 16], strides = [1, 1, 1]} : vector<3x2x16xf32> to vector<1x2x16xf32>
    %30 = vector.shape_cast %29 : vector<1x2x16xf32> to vector<2x16xf32>
    %31 = vector.shape_cast %30 : vector<2x16xf32> to vector<2x1x16xf32>
    %c2 = arith.constant 2 : index
    %c0_15 = arith.constant 0 : index
    %c0_16 = arith.constant 0 : index
    %32 = vector.load %arg3[%c2, %c0_15, %c0_16] : memref<3x32x1xf32, #tpu.memory_space<vmem>>, vector<1x32x1xf32>
    %33 = vector.shape_cast %32 : vector<1x32x1xf32> to vector<32x1xf32>
    %34 = vector.shape_cast %33 : vector<32x1xf32> to vector<1x32x1xf32>
    %35 = vector.broadcast %31 : vector<2x1x16xf32> to vector<2x32x16xf32>
    %36 = vector.broadcast %34 : vector<1x32x1xf32> to vector<2x32x16xf32>
    %37 = arith.mulf %35, %36 : vector<2x32x16xf32>
    %38 = arith.addf %28, %37 : vector<2x32x16xf32>
    %cst_17 = arith.constant dense<0xFF800000> : vector<2x32xf32>
    %39 = vector.multi_reduction <maximumf>, %38, %cst_17 [2] : vector<2x32x16xf32> to vector<2x32xf32>
    %c0_i32 = arith.constant 0 : i32
    %40 = arith.cmpi eq, %arg0, %c0_i32 : i32
    %41 = arith.extui %40 : i1 to i32
    %c0_i32_18 = arith.constant 0 : i32
    %42 = arith.cmpi ne, %41, %c0_i32_18 : i32
    scf.if %42 {
      %cst_25 = arith.constant 0xFF800000 : f32
      %49 = vector.broadcast %cst_25 : f32 to vector<2x32xf32>
      %c0_26 = arith.constant 0 : index
      %c0_27 = arith.constant 0 : index
      %50 = vector.load %arg9[%c0_26, %c0_27] : memref<2x32xf32, #tpu.memory_space<vmem>>, vector<2x32xf32>
      tpu.vector_store %arg9[%c0_26, %c0_27], %49 {strides = array<i32>} : memref<2x32xf32, #tpu.memory_space<vmem>>, vector<2x32xf32>,
    } else {
    }
    %c0_19 = arith.constant 0 : index
    %c0_20 = arith.constant 0 : index
    %43 = vector.load %arg9[%c0_19, %c0_20] : memref<2x32xf32, #tpu.memory_space<vmem>>, vector<2x32xf32>
    %44 = arith.maximumf %43, %39 : vector<2x32xf32>
    %c0_21 = arith.constant 0 : index
    %c0_22 = arith.constant 0 : index
    %45 = vector.load %arg9[%c0_21, %c0_22] : memref<2x32xf32, #tpu.memory_space<vmem>>, vector<2x32xf32>
    tpu.vector_store %arg9[%c0_21, %c0_22], %44 {strides = array<i32>} : memref<2x32xf32, #tpu.memory_space<vmem>>, vector<2x32xf32>,
    %c0_i32_23 = arith.constant 0 : i32
    %46 = arith.cmpi eq, %arg0, %c0_i32_23 : i32
    %47 = arith.extui %46 : i1 to i32
    %c0_i32_24 = arith.constant 0 : i32
    %48 = arith.cmpi ne, %47, %c0_i32_24 : i32
    scf.if %48 {
      %c0_25 = arith.constant 0 : index
      %c0_26 = arith.constant 0 : index
      %49 = vector.load %arg9[%c0_25, %c0_26] : memref<2x32xf32, #tpu.memory_space<vmem>>, vector<2x32xf32>
      %c0_27 = arith.constant 0 : index
      %c0_28 = arith.constant 0 : index
      %50 = vector.load %arg4[%c0_27, %c0_28] : memref<1x32xf32, #tpu.memory_space<vmem>>, vector<1x32xf32>
      %51 = vector.broadcast %50 : vector<1x32xf32> to vector<2x32xf32>
      %52 = arith.addf %49, %51 : vector<2x32xf32>
      %cst_29 = arith.constant 0.000000e+00 : f32
      %53 = vector.broadcast %cst_29 : f32 to vector<2x32xf32>
      %54 = arith.maximumf %52, %53 : vector<2x32xf32>
      %c0_30 = arith.constant 0 : index
      %c0_31 = arith.constant 0 : index
      %55 = vector.load %arg5[%c0_30, %c0_31] : memref<32x8xf32, #tpu.memory_space<vmem>>, vector<32x8xf32>
      %cst_32 = arith.constant dense<0.000000e+00> : vector<2x8xf32>
      %56 = tpu.matmul %54, %55, %cst_32 {dimension_numbers = #tpu.dot_dimension_numbers<[1], [0], [0], [1], [0, 0, 1, 1], [], []>} : vector<2x32xf32>, vector<32x8xf32>, vector<2x8xf32> -> vector<2x8xf32>
      %c0_33 = arith.constant 0 : index
      %c0_34 = arith.constant 0 : index
      %57 = vector.load %arg6[%c0_33, %c0_34] : memref<1x8xf32, #tpu.memory_space<vmem>>, vector<1x8xf32>
      %58 = vector.broadcast %57 : vector<1x8xf32> to vector<2x8xf32>
      %59 = arith.addf %56, %58 : vector<2x8xf32>
      %c0_35 = arith.constant 0 : index
      %c0_36 = arith.constant 0 : index
      %60 = vector.load %arg8[%c0_35, %c0_36] : memref<2x8xf32, #tpu.memory_space<vmem>>, vector<2x8xf32>
      tpu.vector_store %arg8[%c0_35, %c0_36], %59 {strides = array<i32>} : memref<2x8xf32, #tpu.memory_space<vmem>>, vector<2x8xf32>,
    } else {
    }
    return
  }
  func.func @transform_0(%arg0: i32) -> (i32, i32, i32) {
    %c0_i32 = arith.constant 0 : i32
    %c0_i32_0 = arith.constant 0 : i32
    %c0_i32_1 = arith.constant 0 : i32
    return %c0_i32, %c0_i32_0, %arg0 : i32, i32, i32
  }
  func.func @transform_1(%arg0: i32) -> (i32, i32, i32) {
    %c0_i32 = arith.constant 0 : i32
    %c0_i32_0 = arith.constant 0 : i32
    %c0_i32_1 = arith.constant 0 : i32
    return %c0_i32, %c0_i32_0, %arg0 : i32, i32, i32
  }
  func.func @transform_2(%arg0: i32) -> (i32, i32, i32) {
    %c0_i32 = arith.constant 0 : i32
    %c0_i32_0 = arith.constant 0 : i32
    %c0_i32_1 = arith.constant 0 : i32
    %c0_i32_2 = arith.constant 0 : i32
    return %c0_i32, %c0_i32_0, %c0_i32_1 : i32, i32, i32
  }
  func.func @transform_3(%arg0: i32) -> (i32, i32) {
    %c0_i32 = arith.constant 0 : i32
    %c0_i32_0 = arith.constant 0 : i32
    %c0_i32_1 = arith.constant 0 : i32
    return %c0_i32, %c0_i32_0 : i32, i32
  }
  func.func @transform_4(%arg0: i32) -> (i32, i32) {
    %c0_i32 = arith.constant 0 : i32
    %c0_i32_0 = arith.constant 0 : i32
    %c0_i32_1 = arith.constant 0 : i32
    return %c0_i32, %c0_i32_0 : i32, i32
  }
  func.func @transform_5(%arg0: i32) -> (i32, i32) {
    %c0_i32 = arith.constant 0 : i32
    %c0_i32_0 = arith.constant 0 : i32
    %c0_i32_1 = arith.constant 0 : i32
    return %c0_i32, %c0_i32_0 : i32, i32
  }
  func.func @transform_6(%arg0: i32) -> (i32, i32, i32) {
    %c0_i32 = arith.constant 0 : i32
    %c0_i32_0 = arith.constant 0 : i32
    %c0_i32_1 = arith.constant 0 : i32
    return %c0_i32, %c0_i32_0, %arg0 : i32, i32, i32
  }
  func.func @transform_7(%arg0: i32) -> (i32, i32) {
    %c0_i32 = arith.constant 0 : i32
    %c0_i32_0 = arith.constant 0 : i32
    %c0_i32_1 = arith.constant 0 : i32
    return %c0_i32, %c0_i32_0 : i32, i32
  }
}

</mosaic_0001>

<llo_original>
// kernel: _attack.1
$region0: #{_attack.1}
  #allocation0 [shape = 'u32[]', space=smem, size = 0x4, offset = 0x4, fixed_abs, tag = 'smem constant byte address 0x4 - core index']
  #allocation1 [shape = 'u32[144,128]{1,0:T(1,128)}', space=vmem, size = 0x12000, scoped, tag = 'internal scratch']
  #allocation2 [shape = 'f32[2,32]{1,0:T(2,128)}', space=vmem, size = 0x400, scoped, tag = 'scratch operand']
  %s0 = inlined_call_operand.vmem [shape: f32[3,2,16], index: 0, kind: input, shape index: {}]
  %s1 = inlined_call_operand.vmem [shape: f32[3,2,16], index: 1, kind: input, shape index: {}, may-alias: {1,6}]
  %s2 = inlined_call_operand.vmem [shape: f32[3,32,1], index: 2, kind: input, shape index: {}]
  %s3 = inlined_call_operand.vmem [shape: f32[1,32], index: 3, kind: input, shape index: {}]
  %s4 = inlined_call_operand.vmem [shape: f32[32,8], index: 4, kind: input, shape index: {}]
  %s5 = inlined_call_operand.vmem [shape: f32[1,8], index: 5, kind: input, shape index: {}]
  %s6 = inlined_call_operand.vmem [shape: f32[3,2,16], index: 6, kind: output, shape index: {0}, may-alias: {1,6}]
  %s7 = inlined_call_operand.vmem [shape: f32[2,8], index: 7, kind: output, shape index: {1}]
  %8 = xla_tuple %s6, %s7
  %s9 = sld [smem:[#allocation0]]
  $region50: #{_attack.1} parent=0
    _
  %s11 = ssub.s32 1, %s9
  %s12 = scalar_select 0, %s11, %s9
  // Predicated region
  $region2: #{_attack.1} parent=0 // pred_check
    _
  $region3: #{_attack.1} parent=0 // pred_check_branch
    %14 = sbr.rel (0) target = $region5
  $region4: #{_attack.1} parent=0 // pred_region
    _
  $region5: #{_attack.1} parent=0 // pred_fallthru
    _
  // Predicated region
  $region6: #{_attack.1} parent=0 // pred_check
    _
  $region7: #{_attack.1} parent=0 // pred_check_branch
    %16 = sbr.rel (0) target = $region9
  $region8: #{_attack.1} parent=0 // pred_region
    _
  $region9: #{_attack.1} parent=0 // pred_fallthru
    _
  // Predicated region
  $region10: #{_attack.1} parent=0 // pred_check
    _
  $region11: #{_attack.1} parent=0 // pred_check_branch
    %18 = sbr.rel (0) target = $region13
  $region12: #{_attack.1} parent=0 // pred_region
    _
  $region13: #{_attack.1} parent=0 // pred_fallthru
    _
  // Predicated region
  $region14: #{_attack.1} parent=0 // pred_check
    _
  $region15: #{_attack.1} parent=0 // pred_check_branch
    %20 = sbr.rel (0) target = $region17
  $region16: #{_attack.1} parent=0 // pred_region
    _
  $region17: #{_attack.1} parent=0 // pred_fallthru
    _
  // Predicated region
  $region18: #{_attack.1} parent=0 // pred_check
    _
  $region19: #{_attack.1} parent=0 // pred_check_branch
    %22 = sbr.rel (0) target = $region21
  $region20: #{_attack.1} parent=0 // pred_region
    _
  $region21: #{_attack.1} parent=0 // pred_fallthru
    _
  // Predicated region
  $region22: #{_attack.1} parent=0 // pred_check
    _
  $region23: #{_attack.1} parent=0 // pred_check_branch
    %24 = sbr.rel (0) target = $region25
  $region24: #{_attack.1} parent=0 // pred_region
    _
  $region25: #{_attack.1} parent=0 // pred_fallthru
    _
  %v25 = vld [vmem:[%s0] sm:$0x3]
  %v26 = vld [vmem:[%s0 + $0x2] sm:$0x3]
  %v27 = vld [vmem:[%s0 + $0x4] sm:$0x3]
  %v28 = vmul.f32 %v25, 0.01
  %v29 = vmul.f32 %v26, 0.01
  %v30 = vmul.f32 %v27, 0.01
  %v31 = vmax.f32 %v28, -0.05
  %v32 = vmax.f32 %v29, -0.05
  %v33 = vmax.f32 %v30, -0.05
  %v34 = vmin.f32 %v31, 0.05
  %v35 = vmin.f32 %v32, 0.05
  %v36 = vmin.f32 %v33, 0.05
  %v37 = vld [vmem:[%s1] sm:$0x3]
  %v38 = vld [vmem:[%s1 + $0x2] sm:$0x3]
  %v39 = vld [vmem:[%s1 + $0x4] sm:$0x3]
  %v40 = vadd.f32 %v37, %v34
  %v41 = vadd.f32 %v38, %v35
  %v42 = vadd.f32 %v39, %v36
  %vm43 = vcmask 123904
  %44 = vst.msk [vmem:[%s6] sm:$0x3] %vm43, %v40
  %45 = vst.msk [vmem:[%s6 + $0x2] sm:$0x3] %vm43, %v41
  %46 = vst.msk [vmem:[%s6 + $0x4] sm:$0x3] %vm43, %v42
  %v49 = vunpack.c.l.s4 1966171168
  %v50 = vunpack.c.0.s8 %v49
  %v51 = vlaneseq
  %v52 = vshrl.u32 %v51, 7
  %v53 = vsub.s32 %v50, %v52
  %v54 = vrot.slane %v40, %v53
  %v55 = vcombine.high %v54, %v54
  %v57 = vunpack.c.l.s4 1966171168
  %v58 = vunpack.c.0.s8 %v57
  %v59 = vlaneseq
  %v60 = vshrl.u32 %v59, 7
  %v61 = vsub.s32 %v58, %v60
  %v62 = vrot.slane %v54, %v61
  %v64 = vunpack.c.l.s4 1966171168
  %v65 = vunpack.c.0.s8 %v64
  %v66 = vlaneseq
  %v67 = vshrl.u32 %v66, 7
  %v68 = vsub.s32 %v65, %v67
  %v69 = vrot.slane %v55, %v68
  %v70 = vld [vmem:[%s2] sm:$0xff]
  %v71 = vld [vmem:[%s2 + $0x8] sm:$0xff]
  %v72 = vld [vmem:[%s2 + $0x10] sm:$0xff]
  %v73 = vld [vmem:[%s2 + $0x18] sm:$0xff]
  %v74 = vlaneseq
  %v75 = vshrl.u32 %v74, 7
  %v76 = vsub.s32 0, %v75
  %v77 = vrot.slane %v62, %v76
  %v78 = vlaneseq
  %v79 = vshrl.u32 %v78, 7
  %v80 = vsub.s32 0, %v79
  %v81 = vrot.slane %v69, %v80
  %85 = vset.pattern.permute.xlu0 0
  %86 = vperm.xlu0 %85, %v70
  %v87 = vpop.permute.xlu0 %86
  %90 = vset.pattern.permute.xlu0 0
  %91 = vperm.xlu0 %90, %v71
  %v92 = vpop.permute.xlu0 %91
  %95 = vset.pattern.permute.xlu0 0
  %96 = vperm.xlu0 %95, %v72
  %v97 = vpop.permute.xlu0 %96
  %100 = vset.pattern.permute.xlu0 0
  %101 = vperm.xlu0 %100, %v73
  %v102 = vpop.permute.xlu0 %101
  %v104 = vmul.f32 %v77, %v87
  %v105 = vmul.f32 %v77, %v92
  %v106 = vmul.f32 %v77, %v97
  %v107 = vmul.f32 %v77, %v102
  %v108 = vmul.f32 %v81, %v87
  %v109 = vmul.f32 %v81, %v92
  %v110 = vmul.f32 %v81, %v97
  %v111 = vmul.f32 %v81, %v102
  %v114 = vunpack.c.l.s4 1966171168
  %v115 = vunpack.c.0.s8 %v114
  %v116 = vlaneseq
  %v117 = vshrl.u32 %v116, 7
  %v118 = vsub.s32 %v115, %v117
  %v119 = vrot.slane %v41, %v118
  %v120 = vcombine.high %v119, %v119
  %v122 = vunpack.c.l.s4 1966171168
  %v123 = vunpack.c.0.s8 %v122
  %v124 = vlaneseq
  %v125 = vshrl.u32 %v124, 7
  %v126 = vsub.s32 %v123, %v125
  %v127 = vrot.slane %v119, %v126
  %v129 = vunpack.c.l.s4 1966171168
  %v130 = vunpack.c.0.s8 %v129
  %v131 = vlaneseq
  %v132 = vshrl.u32 %v131, 7
  %v133 = vsub.s32 %v130, %v132
  %v134 = vrot.slane %v120, %v133
  %s135 = scalar_lea.vmem %s2, 32
  %v136 = vld [vmem:[%s135] sm:$0xff]
  %v137 = vld [vmem:[%s135 + $0x8] sm:$0xff]
  %v138 = vld [vmem:[%s135 + $0x10] sm:$0xff]
  %v139 = vld [vmem:[%s135 + $0x18] sm:$0xff]
  %v140 = vlaneseq
  %v141 = vshrl.u32 %v140, 7
  %v142 = vsub.s32 0, %v141
  %v143 = vrot.slane %v127, %v142
  %v144 = vlaneseq
  %v145 = vshrl.u32 %v144, 7
  %v146 = vsub.s32 0, %v145
  %v147 = vrot.slane %v134, %v146
  %151 = vset.pattern.permute.xlu0 0
  %152 = vperm.xlu0 %151, %v136
  %v153 = vpop.permute.xlu0 %152
  %156 = vset.pattern.permute.xlu0 0
  %157 = vperm.xlu0 %156, %v137
  %v158 = vpop.permute.xlu0 %157
  %161 = vset.pattern.permute.xlu0 0
  %162 = vperm.xlu0 %161, %v138
  %v163 = vpop.permute.xlu0 %162
  %166 = vset.pattern.permute.xlu0 0
  %167 = vperm.xlu0 %166, %v139
  %v168 = vpop.permute.xlu0 %167
  %v170 = vmul.f32 %v143, %v153
  %v171 = vmul.f32 %v143, %v158
  %v172 = vmul.f32 %v143, %v163
  %v173 = vmul.f32 %v143, %v168
  %v174 = vmul.f32 %v147, %v153
  %v175 = vmul.f32 %v147, %v158
  %v176 = vmul.f32 %v147, %v163
  %v177 = vmul.f32 %v147, %v168
  %v178 = vadd.f32 %v104, %v170
  %v179 = vadd.f32 %v105, %v171
  %v180 = vadd.f32 %v106, %v172
  %v181 = vadd.f32 %v107, %v173
  %v182 = vadd.f32 %v108, %v174
  %v183 = vadd.f32 %v109, %v175
  %v184 = vadd.f32 %v110, %v176
  %v185 = vadd.f32 %v111, %v177
  %v188 = vunpack.c.l.s4 1966171168
  %v189 = vunpack.c.0.s8 %v188
  %v190 = vlaneseq
  %v191 = vshrl.u32 %v190, 7
  %v192 = vsub.s32 %v189, %v191
  %v193 = vrot.slane %v42, %v192
  %v194 = vcombine.high %v193, %v193
  %v196 = vunpack.c.l.s4 1966171168
  %v197 = vunpack.c.0.s8 %v196
  %v198 = vlaneseq
  %v199 = vshrl.u32 %v198, 7
  %v200 = vsub.s32 %v197, %v199
  %v201 = vrot.slane %v193, %v200
  %v203 = vunpack.c.l.s4 1966171168
  %v204 = vunpack.c.0.s8 %v203
  %v205 = vlaneseq
  %v206 = vshrl.u32 %v205, 7
  %v207 = vsub.s32 %v204, %v206
  %v208 = vrot.slane %v194, %v207
  %s209 = scalar_lea.vmem %s2, 64
  %v210 = vld [vmem:[%s209] sm:$0xff]
  %v211 = vld [vmem:[%s209 + $0x8] sm:$0xff]
  %v212 = vld [vmem:[%s209 + $0x10] sm:$0xff]
  %v213 = vld [vmem:[%s209 + $0x18] sm:$0xff]
  %v214 = vlaneseq
  %v215 = vshrl.u32 %v214, 7
  %v216 = vsub.s32 0, %v215
  %v217 = vrot.slane %v201, %v216
  %v218 = vlaneseq
  %v219 = vshrl.u32 %v218, 7
  %v220 = vsub.s32 0, %v219
  %v221 = vrot.slane %v208, %v220
  %225 = vset.pattern.permute.xlu0 0
  %226 = vperm.xlu0 %225, %v210
  %v227 = vpop.permute.xlu0 %226
  %230 = vset.pattern.permute.xlu0 0
  %231 = vperm.xlu0 %230, %v211
  %v232 = vpop.permute.xlu0 %231
  %235 = vset.pattern.permute.xlu0 0
  %236 = vperm.xlu0 %235, %v212
  %v237 = vpop.permute.xlu0 %236
  %240 = vset.pattern.permute.xlu0 0
  %241 = vperm.xlu0 %240, %v213
  %v242 = vpop.permute.xlu0 %241
  %v244 = vmul.f32 %v217, %v227
  %v245 = vmul.f32 %v217, %v232
  %v246 = vmul.f32 %v217, %v237
  %v247 = vmul.f32 %v217, %v242
  %v248 = vmul.f32 %v221, %v227
  %v249 = vmul.f32 %v221, %v232
  %v250 = vmul.f32 %v221, %v237
  %v251 = vmul.f32 %v221, %v242
  %v252 = vadd.f32 %v178, %v244
  %v253 = vadd.f32 %v179, %v245
  %v254 = vadd.f32 %v180, %v246
  %v255 = vadd.f32 %v181, %v247
  %v256 = vadd.f32 %v182, %v248
  %v257 = vadd.f32 %v183, %v249
  %v258 = vadd.f32 %v184, %v250
  %v259 = vadd.f32 %v185, %v251
  %vm260 = vcmask 130048
  %v261 = vsel %vm260, %v252, -inf
  %262 = vmax.xlane.f32.xlu0 %v261
  %v263 = vpop.xlane.xlu0 %262
  %v264 = vsel %vm260, %v253, -inf
  %265 = vmax.xlane.f32.xlu0 %v264
  %v266 = vpop.xlane.xlu0 %265
  %v267 = vsel %vm260, %v254, -inf
  %268 = vmax.xlane.f32.xlu0 %v267
  %v269 = vpop.xlane.xlu0 %268
  %v270 = vsel %vm260, %v255, -inf
  %271 = vmax.xlane.f32.xlu0 %v270
  %v272 = vpop.xlane.xlu0 %271
  %v273 = vsel %vm260, %v256, -inf
  %274 = vmax.xlane.f32.xlu0 %v273
  %v275 = vpop.xlane.xlu0 %274
  %v276 = vsel %vm260, %v257, -inf
  %277 = vmax.xlane.f32.xlu0 %v276
  %v278 = vpop.xlane.xlu0 %277
  %v279 = vsel %vm260, %v258, -inf
  %280 = vmax.xlane.f32.xlu0 %v279
  %v281 = vpop.xlane.xlu0 %280
  %v282 = vsel %vm260, %v259, -inf
  %283 = vmax.xlane.f32.xlu0 %v282
  %v284 = vpop.xlane.xlu0 %283
  %p285 = scmp.eq.s32.totalorder 0, 0
  // Predicated region
  $region26: #{_attack.1} parent=0 // pred_check
    %p286 = pneg %p285
  $region27: #{_attack.1} parent=0 // pred_check_branch
    %288 = sbr.rel (%p286) target = $region29
  $region28: #{_attack.1} parent=0 // pred_region
    %vm289 = vcmask 254976
    %290 = vst.msk [vmem:[#allocation2] sm:$0x3] %vm289, -inf
  $region29: #{_attack.1} parent=0 // pred_fallthru
    _
  %v291 = vld [vmem:[#allocation2] sm:$0x3]
  %v300 = vlaneseq
  %v301 = vand.u32 %v300, 127
  %v302 = vlaneseq
  %v303 = vshrl.u32 %v302, 7
  %v304 = vsub.s32 %v301, %v303
  %v305 = vrot.slane %v263, %v304
  %v306 = vadd.s32 %v301, 4294967288
  %v307 = vlaneseq
  %v308 = vshrl.u32 %v307, 7
  %v309 = vsub.s32 %v306, %v308
  %v310 = vrot.slane %v266, %v309
  %vm311 = vcmask 130112
  %v312 = vsel %vm311, %v310, %v305
  %v313 = vadd.s32 %v301, 4294967280
  %v314 = vlaneseq
  %v315 = vshrl.u32 %v314, 7
  %v316 = vsub.s32 %v313, %v315
  %v317 = vrot.slane %v269, %v316
  %vm318 = vcmask 195712
  %v319 = vsel %vm318, %v317, %v312
  %v320 = vadd.s32 %v301, 4294967272
  %v321 = vlaneseq
  %v322 = vshrl.u32 %v321, 7
  %v323 = vsub.s32 %v320, %v322
  %v324 = vrot.slane %v272, %v323
  %vm325 = vcmask 261312
  %v326 = vsel %vm325, %v324, %v319
  %v327 = vlaneseq
  %v328 = vshrl.u32 %v327, 7
  %v329 = vsub.s32 %v301, %v328
  %v330 = vrot.slane %v275, %v329
  %v331 = vlaneseq
  %v332 = vshrl.u32 %v331, 7
  %v333 = vsub.s32 %v306, %v332
  %v334 = vrot.slane %v278, %v333
  %v335 = vsel %vm311, %v334, %v330
  %v336 = vlaneseq
  %v337 = vshrl.u32 %v336, 7
  %v338 = vsub.s32 %v313, %v337
  %v339 = vrot.slane %v281, %v338
  %v340 = vsel %vm318, %v339, %v335
  %v341 = vlaneseq
  %v342 = vshrl.u32 %v341, 7
  %v343 = vsub.s32 %v320, %v342
  %v344 = vrot.slane %v284, %v343
  %v345 = vsel %vm325, %v344, %v340
  %vm346 = vcmask 1041409
  %v347 = vsel %vm346, %v345, %v326
  %v349 = vmax.f32 %v291, %v347
  %vm350 = vcmask 254976
  %351 = vst.msk [vmem:[#allocation2] sm:$0x3] %vm350, %v349
  // Predicated region
  $region30: #{_attack.1} parent=0 // pred_check
    %p352 = pneg %p285
  $region31: #{_attack.1} parent=0 // pred_check_branch
    %354 = sbr.rel (%p352) target = $region33
  $region32: #{_attack.1} parent=0 // pred_region
    %v355 = vld [vmem:[#allocation2] sm:$0x3]
    %v356 = vld [vmem:[%s3] sm:$0x1]
    %v358 = vlaneseq
    %v359 = vshrl.u32 %v358, 7
    %v360 = vsub.s32 0, %v359
    %v361 = vrot.slane %v356, %v360
    %v363 = vadd.f32 %v355, %v361
    %v364 = vmax.f32 %v363, 0.0
    %v365 = vld [vmem:[%s4] sm:$0xff]
    %v366 = vld [vmem:[%s4 + $0x8] sm:$0xff]
    %v367 = vld [vmem:[%s4 + $0x10] sm:$0xff]
    %v368 = vld [vmem:[%s4 + $0x18] sm:$0xff]
    %v369 = vld [vmem:[%s5] sm:$0x1]
    %v371 = vlaneseq
    %v372 = vshrl.u32 %v371, 7
    %v373 = vsub.s32 0, %v372
    %v374 = vrot.slane %v369, %v373
    %vm376 = vcmask 261120
    %v378 = vsel %vm376, %v364, 0
    %380 = vmatprep.subr.mxu0 0.0
    %381 = vmatpush1.msra.mxu0 0.0
    %382 = vmatprep.subr.mxu0 0.0
    %383 = vmatpush1.msra.mxu0 0.0
    %384 = vmatprep.subr.mxu0 0.0
    %385 = vmatpush1.msra.mxu0 0.0
    %386 = vmatprep.subr.mxu0 0.0
    %387 = vmatpush1.msra.mxu0 0.0
    %388 = vmatprep.subr.mxu0 0.0
    %389 = vmatpush1.msra.mxu0 0.0
    %390 = vmatprep.subr.mxu0 0.0
    %391 = vmatpush1.msra.mxu0 0.0
    %392 = vmatprep.subr.mxu0 0.0
    %393 = vmatpush1.msra.mxu0 0.0
    %394 = vmatprep.subr.mxu0 0.0
    %395 = vmatpush1.msra.mxu0 0.0
    %396 = vmatprep.subr.mxu0 0.0
    %397 = vmatpush1.msra.mxu0 0.0
    %398 = vmatprep.subr.mxu0 0.0
    %399 = vmatpush1.msra.mxu0 0.0
    %400 = vmatprep.subr.mxu0 0.0
    %401 = vmatpush1.msra.mxu0 0.0
    %402 = vmatprep.subr.mxu0 0.0
    %403 = vmatpush1.msra.mxu0 0.0
    %404 = vmatprep.subr.mxu0 0.0
    %405 = vmatpush1.msra.mxu0 %v368
    %406 = vmatprep.subr.mxu0 0.0
    %407 = vmatpush1.msra.mxu0 %v367
    %408 = vmatprep.subr.mxu0 0.0
    %409 = vmatpush1.msra.mxu0 %v366
    %410 = vmatprep.subr.mxu0 0.0
    %411 = vmatpush1.msra.mxu0 %v365
    %412 = vmatprep.subr.mxu0 0.0
    %413 = vmatpush2.msra.mxu0 0.0
    %414 = vmatprep.subr.mxu0 0.0
    %415 = vmatpush2.msra.mxu0 0.0
    %416 = vmatprep.subr.mxu0 0.0
    %417 = vmatpush2.msra.mxu0 0.0
    %418 = vmatprep.subr.mxu0 0.0
    %419 = vmatpush2.msra.mxu0 0.0
    %420 = vmatprep.subr.mxu0 0.0
    %421 = vmatpush2.msra.mxu0 0.0
    %422 = vmatprep.subr.mxu0 0.0
    %423 = vmatpush2.msra.mxu0 0.0
    %424 = vmatprep.subr.mxu0 0.0
    %425 = vmatpush2.msra.mxu0 0.0
    %426 = vmatprep.subr.mxu0 0.0
    %427 = vmatpush2.msra.mxu0 0.0
    %428 = vmatprep.subr.mxu0 0.0
    %429 = vmatpush2.msra.mxu0 0.0
    %430 = vmatprep.subr.mxu0 0.0
    %431 = vmatpush2.msra.mxu0 0.0
    %432 = vmatprep.subr.mxu0 0.0
    %433 = vmatpush2.msra.mxu0 0.0
    %434 = vmatprep.subr.mxu0 0.0
    %435 = vmatpush2.msra.mxu0 0.0
    %436 = vmatprep.subr.mxu0 0.0
    %437 = vmatpush2.msra.mxu0 0.0
    %438 = vmatprep.subr.mxu0 0.0
    %439 = vmatpush2.msra.mxu0 0.0
    %440 = vmatprep.subr.mxu0 0.0
    %441 = vmatpush2.msra.mxu0 0.0
    %442 = vmatprep.subr.mxu0 0.0
    %443 = vmatpush2.msra.mxu0 0.0
    %444 = vmatprep.mubr.f32.mxu0 0.0
    %445 = vmatmul.mubr.f32.gmra.mxu0 %v378
    %v446 = vpop.f32.mrf.mxu0
    %v447 = vadd.f32 %v374, %v446
    %v448 = vpop.f32.mrf.mxu0
    %449 = vdwg.mxu0
    %vm450 = vcmask 58368
    %451 = vst.msk [vmem:[%s7] sm:$0x3] %vm450, %v447
  $region33: #{_attack.1} parent=0 // pred_fallthru
    _
  // Predicated region
  $region34: #{_attack.1} parent=0 // pred_check
    _
  $region35: #{_attack.1} parent=0 // pred_check_branch
    %453 = sbr.rel (0) target = $region37
  $region36: #{_attack.1} parent=0 // pred_region
    _
  $region37: #{_attack.1} parent=0 // pred_fallthru
    _
  // Predicated region
  $region38: #{_attack.1} parent=0 // pred_check
    _
  $region39: #{_attack.1} parent=0 // pred_check_branch
    %455 = sbr.rel (0) target = $region41
  $region40: #{_attack.1} parent=0 // pred_region
    _
  $region41: #{_attack.1} parent=0 // pred_fallthru
    _
  // Predicated region
  $region42: #{_attack.1} parent=0 // pred_check
    _
  $region43: #{_attack.1} parent=0 // pred_check_branch
    %457 = sbr.rel (0) target = $region45
  $region44: #{_attack.1} parent=0 // pred_region
    _
  $region45: #{_attack.1} parent=0 // pred_fallthru
    _
  // Predicated region
  $region46: #{_attack.1} parent=0 // pred_check
    _
  $region47: #{_attack.1} parent=0 // pred_check_branch
    %459 = sbr.rel (0) target = $region49
  $region48: #{_attack.1} parent=0 // pred_region
    _
  $region49: #{_attack.1} parent=0 // pred_fallthru
    _

</llo_original>
